<compile_context>
chip_gen: v7x
topology: tpu7x:2x2x1
jax: 0.10.0
libtpu: 0.0.40
codegen_flags: <defaults>
</compile_context>

<pallas_src>
import functools

import jax
import jax.numpy as jnp
from jax.experimental import pallas as pl
from jax.experimental.pallas import tpu as pltpu

LANES = 128
SUBLANES = 8


def _focal_sum_kernel(x_ref, t_ref, out_ref, *, gamma, binary_targets,
                      tile_rows, chunk_rows, steps, nblocks, rows_in_last,
                      has_dups):
    """Accumulates sum((1-pt)**gamma * bce) of this block into out_ref.

    out_ref is a (1, 8, 128) VMEM-resident accumulator for the current split
    (same output block index across the inner "arbitrary" grid axis).
    """
    split = pl.program_id(0)
    step = pl.program_id(1)

    @pl.when(step == 0)
    def _init():
        out_ref[...] = jnp.zeros_like(out_ref)

    block_idx = split * steps + step
    n_chunks = tile_rows // chunk_rows

    def accum_chunk(c, valid_rows=None):
        start = c * chunk_rows
        if not isinstance(start, int):
            start = pl.multiple_of(start, chunk_rows)
        x = x_ref[pl.ds(start, chunk_rows), :].astype(jnp.float32)
        t = t_ref[pl.ds(start, chunk_rows), :].astype(jnp.float32)

        # Numerically-stable binary_cross_entropy_with_logits pieces.
        z = jnp.exp(-jnp.abs(x))          # EUP
        log_term = jnp.log1p(z)           # EUP

        if binary_targets:
            # Exact for t in {0,1}:
            #   cond = (t==1) == (x>=0)
            #   bce  = where(cond, 0, |x|) + log1p(z)
            #   pt   = exp(-bce) = where(cond, 1, z) / (1 + z)
            cond = (t >= 0.5) == (x >= 0.0)
            bce = jnp.where(cond, 0.0, jnp.abs(x)) + log_term
            pt = jnp.where(cond, 1.0, z) * pl.reciprocal(1.0 + z, approx=True)
        else:
            bce = jnp.maximum(x, 0.0) - x * t + log_term
            pt = jnp.exp(-bce)

        one_minus_pt = 1.0 - pt
        g = float(gamma)
        if g == int(g) and 0 <= int(g) <= 8:
            # Integer-gamma fast path: repeated multiply instead of pow
            # (pow with a float exponent lowers to exp(g*log(x)) on the EUP).
            gi = int(g)
            mod = jnp.ones_like(one_minus_pt) if gi == 0 else one_minus_pt
            for _ in range(gi - 1):
                mod = mod * one_minus_pt
        else:
            mod = one_minus_pt ** jnp.float32(g)

        f = mod * bce
        if valid_rows is not None:
            # Only emitted for the single boundary chunk of the last block.
            rid = jax.lax.broadcasted_iota(jnp.int32, f.shape, 0)
            f = jnp.where(rid < valid_rows, f, 0.0)

        # Cheap VPU partial reduce into the resident accumulator.
        out_ref[...] += f.reshape(-1, SUBLANES, LANES).sum(axis=0,
                                                           keepdims=True)

    def run_chunks(count):
        if count <= 0:
            return
        if count == 1:
            accum_chunk(0)
        else:
            def body(c, carry):
                accum_chunk(c)
                return carry
            jax.lax.fori_loop(0, count, body, 0)

    def full_block():
        run_chunks(n_chunks)

    last_partial = rows_in_last != tile_rows
    if not last_partial:
        if has_dups:
            pl.when(block_idx < nblocks)(full_block)
        else:
            full_block()
    else:
        @pl.when(block_idx < nblocks - 1)
        def _full_blocks():
            full_block()

        @pl.when(block_idx == nblocks - 1)
        def _last_block():
            nfull = rows_in_last // chunk_rows
            rem = rows_in_last - nfull * chunk_rows
            run_chunks(nfull)
            if rem > 0:
                accum_chunk(nfull, valid_rows=rem)
        # Clamped duplicate iterations (block_idx >= nblocks) match neither
        # branch and are skipped entirely.


def _focal_ref_f32(x, t, gamma):
    """Plain-jnp focal terms (used for tails / tiny-input fallback)."""
    x = x.astype(jnp.float32)
    t = t.astype(jnp.float32)
    bce = jnp.maximum(x, 0.0) - x * t + jnp.log1p(jnp.exp(-jnp.abs(x)))
    pt = jnp.exp(-bce)
    return (1.0 - pt) ** jnp.float32(gamma) * bce


def focal_loss(inputs, targets, alpha=1.0, gamma=2.0, reduction="mean",
               binary_targets=False, tile_rows=6144, chunk_rows=256,
               num_splits=2):
    """JAX/Pallas equivalent of FocalLoss.forward.

    binary_targets=True enables an algebraic rewrite of pt=exp(-bce) that is
    exact for hard {0,1} labels (plus an approx reciprocal, ~1e-4 rel error on
    pt); the default False keeps the general soft-label formula.
    """
    # Mirror the squeeze(dim=-1) handling of the PyTorch module.
    if inputs.ndim > targets.ndim and inputs.shape[-1] == 1:
        inputs = jnp.squeeze(inputs, axis=-1)
    elif targets.ndim > inputs.ndim and targets.shape[-1] == 1:
        targets = jnp.squeeze(targets, axis=-1)
    if inputs.shape != targets.shape:
        raise ValueError(
            f"Target size ({targets.shape}) must be the same as "
            f"input size ({inputs.shape})")
    if reduction not in ("mean", "sum"):
        # TODO(synk): reduction='none' needs a per-element output kernel; the
        # module's default ('mean') and 'sum' are implemented here.
        raise NotImplementedError("reduction='none' not implemented")

    n = int(inputs.size)
    x_flat = inputs.reshape(-1)          # keep native dtype; cast in-kernel
    t_flat = targets.reshape(-1)

    chunk_elems = SUBLANES * LANES       # 1024
    n_main = (n // chunk_elems) * chunk_elems
    tail = n - n_main

    total = jnp.float32(0.0)

    if n_main > 0:
        if tail > 0:
            x_main = jax.lax.slice(x_flat, (0,), (n_main,))
            t_main = jax.lax.slice(t_flat, (0,), (n_main,))
        else:                            # aligned: zero-copy
            x_main, t_main = x_flat, t_flat

        rows = n_main // LANES           # multiple of 8
        x2 = x_main.reshape(rows, LANES)
        t2 = t_main.reshape(rows, LANES)

        # Tile / chunk sizing (multiples of 8, tile a multiple of the chunk).
        tr = max(SUBLANES, (min(int(tile_rows), rows) // SUBLANES) * SUBLANES)
        ch = max(SUBLANES, (min(int(chunk_rows), tr) // SUBLANES) * SUBLANES)
        tr = (tr // ch) * ch

        nblocks = pl.cdiv(rows, tr)
        nsplit = max(1, min(int(num_splits), nblocks))
        steps = pl.cdiv(nblocks, nsplit)
        rows_in_last = rows - (nblocks - 1) * tr
        has_dups = nsplit * steps > nblocks

        def in_map(c, i):
            # Clamp logical block index; clamped duplicates are skipped
            # in-kernel via a scalar pl.when.
            return (jnp.minimum(c * steps + i, nblocks - 1), 0)

        kernel = functools.partial(
            _focal_sum_kernel, gamma=float(gamma),
            binary_targets=bool(binary_targets), tile_rows=tr, chunk_rows=ch,
            steps=steps, nblocks=nblocks, rows_in_last=rows_in_last,
            has_dups=has_dups)

        # 2 inputs x 2 pipeline buffers of the tile + headroom for chunk temps.
        in_block_bytes = (x2.dtype.itemsize + t2.dtype.itemsize) * tr * LANES
        vmem_limit = int(min(max(2 * in_block_bytes + (8 << 20), 32 << 20),
                             56 << 20))

        partials = pl.pallas_call(
            kernel,
            out_shape=jax.ShapeDtypeStruct((nsplit, SUBLANES, LANES),
                                           jnp.float32),
            grid_spec=pltpu.PrefetchScalarGridSpec(
                num_scalar_prefetch=0,
                grid=(nsplit, steps),
                in_specs=[
                    pl.BlockSpec((tr, LANES), in_map),
                    pl.BlockSpec((tr, LANES), in_map),
                ],
                out_specs=pl.BlockSpec((1, SUBLANES, LANES),
                                       lambda c, i: (c, 0, 0)),
            ),
            compiler_params=pltpu.CompilerParams(
                dimension_semantics=("parallel", "arbitrary"),
                vmem_limit_bytes=vmem_limit),
        )(x2, t2)
        total = total + jnp.sum(partials)

    if tail > 0:
        # <=1023-element tail: plain jnp, negligible cost, no pad copy.
        x_t = jax.lax.slice(x_flat, (n_main,), (n,))
        t_t = jax.lax.slice(t_flat, (n_main,), (n,))
        total = total + jnp.sum(_focal_ref_f32(x_t, t_t, float(gamma)))

    total = jnp.float32(alpha) * total
    if reduction == "mean":
        return total / jnp.float32(n)
    return total


def _reference(x, t, alpha, gamma, reduction):
    f = jnp.float32(alpha) * _focal_ref_f32(x, t, gamma)
    return jnp.mean(f) if reduction == "mean" else jnp.sum(f)


if __name__ == "__main__":
    key = jax.random.PRNGKey(0)
    k1, k2, k3, k4 = jax.random.split(key, 4)

    # 1) Main case: logits (2,4,16,16,1) exercising the squeeze path, hard
    #    {0,1} targets, aligned size (zero-copy path), binary fast path.
    B, C, H, W = 2, 4, 16, 16
    logits = jax.random.normal(k1, (B, C, H, W, 1), dtype=jnp.float32)
    targets = (jax.random.uniform(k2, (B, C, H, W)) > 0.5).astype(jnp.float32)
    out = jax.block_until_ready(
        focal_loss(logits, targets, alpha=1.0, gamma=2.0, reduction="mean",
                   binary_targets=True))
    ref = _reference(jnp.squeeze(logits, -1), targets, 1.0, 2.0, "mean")
    assert jnp.allclose(out, ref, rtol=2e-3, atol=1e-5), (out, ref)

    # 2) Unaligned size (1344 elems): aligned prefix through the kernel,
    #    320-element tail via jnp; bf16 logits exercise the in-kernel cast.
    xb = jax.random.normal(k1, (3, 7, 64), dtype=jnp.bfloat16)
    tb = (jax.random.uniform(k2, (3, 7, 64)) > 0.5).astype(jnp.float32)
    out2 = jax.block_until_ready(
        focal_loss(xb, tb, alpha=0.5, gamma=2.0, reduction="sum",
                   binary_targets=True))
    ref2 = _reference(xb, tb, 0.5, 2.0, "sum")
    assert jnp.allclose(out2, ref2, rtol=2e-3, atol=1e-5), (out2, ref2)

    # 3) Soft labels (general path), small tiles forcing multi-block grid,
    #    2 splits, partial last block, and a clamped duplicate iteration.
    xs = jax.random.normal(k3, (5, 8, 128), dtype=jnp.float32)
    ts = jax.random.uniform(k4, (5, 8, 128), dtype=jnp.float32)
    out3 = jax.block_until_ready(
        focal_loss(xs, ts, alpha=1.0, gamma=3.0, reduction="sum",
                   binary_targets=False, tile_rows=16, chunk_rows=8,
                   num_splits=2))
    ref3 = _reference(xs, ts, 1.0, 3.0, "sum")
    assert jnp.allclose(out3, ref3, rtol=1e-4, atol=1e-6), (out3, ref3)

    # 4) Tiny input (<1024 elems): pure-jnp fallback path of the wrapper.
    xt = jax.random.normal(k3, (3, 5, 7), dtype=jnp.float32)
    tt = (jax.random.uniform(k4, (3, 5, 7)) > 0.5).astype(jnp.float32)
    out4 = jax.block_until_ready(focal_loss(xt, tt, reduction="mean"))
    ref4 = _reference(xt, tt, 1.0, 2.0, "mean")
    assert jnp.allclose(out4, ref4, rtol=1e-5, atol=1e-6), (out4, ref4)

    print("KERNEL_OK")
</pallas_src>

<mosaic_0001>
module attributes {stable_mosaic.version = 11 : i64} {
  func.func @_focal_sum_kernel(%arg0: i32, %arg1: i32, %arg2: memref<16x128xf32, #tpu.memory_space<vmem>>, %arg3: memref<16x128xf32, #tpu.memory_space<vmem>>, %arg4: memref<1x8x128xf32, #tpu.memory_space<vmem>>) attributes {dimension_semantics = [#tpu.dimension_semantics<parallel>, #tpu.dimension_semantics<arbitrary>], iteration_bounds = array<i64: 1, 1>, scalar_prefetch = 0 : i64, scratch_operands = 0 : i64, tpu.core_type = #tpu.core_type<tc>, window_params = [{transform_indices = @transform_0, window_bounds = array<i64: 16, 128>}, {transform_indices = @transform_1, window_bounds = array<i64: 16, 128>}, {transform_indices = @transform_2, window_bounds = array<i64: 1, 8, 128>}]} {
    %c0_i32 = arith.constant 0 : i32
    %0 = arith.cmpi eq, %arg1, %c0_i32 : i32
    %1 = arith.extui %0 : i1 to i32
    %c0_i32_0 = arith.constant 0 : i32
    %2 = arith.cmpi ne, %1, %c0_i32_0 : i32
    scf.if %2 {
      %cst_18 = arith.constant 0.000000e+00 : f32
      %36 = vector.broadcast %cst_18 : f32 to vector<1x8x128xf32>
      %c0_19 = arith.constant 0 : index
      %c0_20 = arith.constant 0 : index
      %c0_21 = arith.constant 0 : index
      %37 = vector.load %arg4[%c0_19, %c0_20, %c0_21] : memref<1x8x128xf32, #tpu.memory_space<vmem>>, vector<1x8x128xf32>
      tpu.vector_store %arg4[%c0_19, %c0_20, %c0_21], %36 {strides = array<i32>} : memref<1x8x128xf32, #tpu.memory_space<vmem>>, vector<1x8x128xf32>,
    } else {
    }
    %c0 = arith.constant 0 : index
    %c0_1 = arith.constant 0 : index
    %3 = vector.load %arg2[%c0, %c0_1] : memref<16x128xf32, #tpu.memory_space<vmem>>, vector<16x128xf32>
    %c0_2 = arith.constant 0 : index
    %c0_3 = arith.constant 0 : index
    %4 = vector.load %arg3[%c0_2, %c0_3] : memref<16x128xf32, #tpu.memory_space<vmem>>, vector<16x128xf32>
    %5 = math.absf %3 : vector<16x128xf32>
    %cst = arith.constant 0.000000e+00 : f32
    %6 = vector.broadcast %cst : f32 to vector<16x128xf32>
    %7 = arith.subf %6, %5 : vector<16x128xf32>
    %8 = math.exp %7 : vector<16x128xf32>
    %9 = math.log1p %8 : vector<16x128xf32>
    %cst_4 = arith.constant 5.000000e-01 : f32
    %10 = vector.broadcast %cst_4 : f32 to vector<16x128xf32>
    %11 = arith.cmpf oge, %4, %10 : vector<16x128xf32>
    %cst_5 = arith.constant 0.000000e+00 : f32
    %12 = vector.broadcast %cst_5 : f32 to vector<16x128xf32>
    %13 = arith.cmpf oge, %3, %12 : vector<16x128xf32>
    %14 = arith.xori %11, %13 : vector<16x128xi1>
    %cst_6 = arith.constant dense<true> : vector<16x128xi1>
    %15 = arith.xori %14, %cst_6 : vector<16x128xi1>
    %16 = math.absf %3 : vector<16x128xf32>
    %cst_7 = arith.constant 0.000000e+00 : f32
    %17 = vector.broadcast %cst_7 : f32 to vector<16x128xf32>
    %18 = arith.select %15, %17, %16 : vector<16x128xi1>, vector<16x128xf32>
    %19 = arith.addf %18, %9 : vector<16x128xf32>
    %cst_8 = arith.constant 1.000000e+00 : f32
    %20 = vector.broadcast %cst_8 : f32 to vector<16x128xf32>
    %21 = arith.select %15, %20, %8 : vector<16x128xi1>, vector<16x128xf32>
    %cst_9 = arith.constant 1.000000e+00 : f32
    %22 = vector.broadcast %cst_9 : f32 to vector<16x128xf32>
    %23 = arith.addf %22, %8 : vector<16x128xf32>
    %24 = tpu.reciprocal %23 {approx = true} : vector<16x128xf32> -> vector<16x128xf32>
    %25 = arith.mulf %21, %24 : vector<16x128xf32>
    %cst_10 = arith.constant 1.000000e+00 : f32
    %26 = vector.broadcast %cst_10 : f32 to vector<16x128xf32>
    %27 = arith.subf %26, %25 : vector<16x128xf32>
    %28 = arith.mulf %27, %27 : vector<16x128xf32>
    %29 = arith.mulf %28, %19 : vector<16x128xf32>
    %c0_11 = arith.constant 0 : index
    %c0_12 = arith.constant 0 : index
    %c0_13 = arith.constant 0 : index
    %30 = vector.load %arg4[%c0_11, %c0_12, %c0_13] : memref<1x8x128xf32, #tpu.memory_space<vmem>>, vector<1x8x128xf32>
    %31 = vector.shape_cast %29 : vector<16x128xf32> to vector<2x8x128xf32>
    %cst_14 = arith.constant dense<0.000000e+00> : vector<8x128xf32>
    %32 = vector.multi_reduction <add>, %31, %cst_14 [0] : vector<2x8x128xf32> to vector<8x128xf32>
    %33 = vector.shape_cast %32 : vector<8x128xf32> to vector<1x8x128xf32>
    %34 = arith.addf %30, %33 : vector<1x8x128xf32>
    %c0_15 = arith.constant 0 : index
    %c0_16 = arith.constant 0 : index
    %c0_17 = arith.constant 0 : index
    %35 = vector.load %arg4[%c0_15, %c0_16, %c0_17] : memref<1x8x128xf32, #tpu.memory_space<vmem>>, vector<1x8x128xf32>
    tpu.vector_store %arg4[%c0_15, %c0_16, %c0_17], %34 {strides = array<i32>} : memref<1x8x128xf32, #tpu.memory_space<vmem>>, vector<1x8x128xf32>,
    return
  }
  func.func @transform_0(%arg0: i32, %arg1: i32) -> (i32, i32) {
    %c1_i32 = arith.constant 1 : i32
    %0 = arith.muli %arg0, %c1_i32 : i32
    %1 = arith.addi %0, %arg1 : i32
    %c0_i32 = arith.constant 0 : i32
    %2 = arith.minsi %1, %c0_i32 : i32
    %c0_i32_0 = arith.constant 0 : i32
    %c0_i32_1 = arith.constant 0 : i32
    return %2, %c0_i32_0 : i32, i32
  }
  func.func @transform_1(%arg0: i32, %arg1: i32) -> (i32, i32) {
    %c1_i32 = arith.constant 1 : i32
    %0 = arith.muli %arg0, %c1_i32 : i32
    %1 = arith.addi %0, %arg1 : i32
    %c0_i32 = arith.constant 0 : i32
    %2 = arith.minsi %1, %c0_i32 : i32
    %c0_i32_0 = arith.constant 0 : i32
    %c0_i32_1 = arith.constant 0 : i32
    return %2, %c0_i32_0 : i32, i32
  }
  func.func @transform_2(%arg0: i32, %arg1: i32) -> (i32, i32, i32) {
    %c0_i32 = arith.constant 0 : i32
    %c0_i32_0 = arith.constant 0 : i32
    %c0_i32_1 = arith.constant 0 : i32
    return %arg0, %c0_i32, %c0_i32_0 : i32, i32, i32
  }
}

</mosaic_0001>

<llo_original>
// kernel: tpu_custom_call.1
$region0: #{tpu_custom_call.1}
  #allocation0 [shape = 'u32[]', space=smem, size = 0x4, offset = 0x4, fixed_abs, tag = 'smem constant byte address 0x4 - core index']
  #allocation1 [shape = 'u32[144,128]{1,0:T(1,128)}', space=vmem, size = 0x12000, scoped, tag = 'internal scratch']
  %s0 = inlined_call_operand.hbm [shape: f32[16,128], index: 0, kind: input, shape index: {}]
  %s1 = inlined_call_operand.hbm [shape: f32[16,128], index: 1, kind: input, shape index: {}]
  %s2 = inlined_call_operand.hbm [shape: f32[1,8,128], index: 2, kind: output, shape index: {}]
  %s3 = sld [smem:[#allocation0]]
  $region30: #{tpu_custom_call.1} parent=0
    _
  %s5 = ssub.s32 1, %s3
  %s6 = scalar_select 0, %s5, %s3
  $region1: #{tpu_custom_call.1} parent=0
    #allocation2 [shape = 'u8[8192]{0}', space=vmem, size = 0x2000, scoped, tag = 'input window, operand 0, single buffered']
    #allocation3 [shape = 's32[1]{0}', space=sflag, size = 0x4, scoped, tag = 'scoped memory for tpu_custom_call.1']
    #allocation4 [shape = 's32[1]{0}', space=sflag, size = 0x4, scoped, tag = 'scoped memory for tpu_custom_call.1']
    #allocation5 [shape = 'u8[8192]{0}', space=vmem, size = 0x2000, scoped, tag = 'input window, operand 1, single buffered']
    #allocation6 [shape = 's32[1]{0}', space=sflag, size = 0x4, scoped, tag = 'scoped memory for tpu_custom_call.1']
    #allocation7 [shape = 'u8[4096]{0}', space=vmem, size = 0x1000, scoped, tag = 'output window, operand 0, single buffered']
    %7 = vsyncpa [#allocation3], 0
    %8 = vsyncpa [#allocation6], 0
    %9 = vsyncpa [#allocation4], 0
    // Predicated region
    $region2: #{tpu_custom_call.1} parent=1 // pred_check
      _
    $region3: #{tpu_custom_call.1} parent=1 // pred_check_branch
      %11 = sbr.rel (0) target = $region5
    $region4: #{tpu_custom_call.1} parent=1 // pred_region
      %s12 = sadd.s32 0, 0
      %p13 = scmp.lt.s32.totalorder %s12, 0
      %s14 = scalar_select %p13, %s12, 0
      %s15 = smul.u32 2, %s14
      %s17 = ssub.s32 256, 256
      %18 = vsyncadd [#allocation3], %s17
      %s19 = smul.addr %s15, 128
      %s20 = scalar_lea.hbm %s0, %s19
      %s21 = sshll.u32 [#allocation2], 4
      %s22 = int_to_ptr.vmem [resolvable:$true] %s21
      %27 = dma.hbm_to_vmem [thread:$0]  %s20, 256, %s22, [#allocation3], 128, 128, 8
    $region5: #{tpu_custom_call.1} parent=1 // pred_fallthru
      _
    // Predicated region
    $region6: #{tpu_custom_call.1} parent=1 // pred_check
      _
    $region7: #{tpu_custom_call.1} parent=1 // pred_check_branch
      %29 = sbr.rel (0) target = $region9
    $region8: #{tpu_custom_call.1} parent=1 // pred_region
      %s30 = sadd.s32 0, 0
      %p31 = scmp.lt.s32.totalorder %s30, 0
      %s32 = scalar_select %p31, %s30, 0
      %s33 = smul.u32 2, %s32
      %s35 = ssub.s32 256, 256
      %36 = vsyncadd [#allocation6], %s35
      %s37 = smul.addr %s33, 128
      %s38 = scalar_lea.hbm %s1, %s37
      %s39 = sshll.u32 [#allocation5], 4
      %s40 = int_to_ptr.vmem [resolvable:$true] %s39
      %45 = dma.hbm_to_vmem [thread:$0]  %s38, 256, %s40, [#allocation6], 128, 128, 8
    $region9: #{tpu_custom_call.1} parent=1 // pred_fallthru
      _
    // Predicated region
    $region10: #{tpu_custom_call.1} parent=1 // pred_check
      _
    $region11: #{tpu_custom_call.1} parent=1 // pred_check_branch
      %47 = sbr.rel (0) target = $region13
    $region12: #{tpu_custom_call.1} parent=1 // pred_region
      %48 = dma.done [#allocation3], 256
    $region13: #{tpu_custom_call.1} parent=1 // pred_fallthru
      _
    // Predicated region
    $region14: #{tpu_custom_call.1} parent=1 // pred_check
      _
    $region15: #{tpu_custom_call.1} parent=1 // pred_check_branch
      %50 = sbr.rel (0) target = $region17
    $region16: #{tpu_custom_call.1} parent=1 // pred_region
      %51 = dma.done [#allocation6], 256
    $region17: #{tpu_custom_call.1} parent=1 // pred_fallthru
      _
    %s52 = sadd.s32 0, 0
    %p53 = scmp.lt.s32.totalorder %s52, 0
    %s54 = scalar_select %p53, %s52, 0
    %s55 = smul.u32 2, %s54
    %s56 = sadd.s32 0, 0
    %p57 = scmp.lt.s32.totalorder %s56, 0
    %s58 = scalar_select %p57, %s56, 0
    %s59 = smul.u32 2, %s58
    %p60 = scmp.eq.s32.totalorder 0, 0
    // Predicated region
    $region18: #{tpu_custom_call.1} parent=1 // pred_check
      %p61 = pneg %p60
    $region19: #{tpu_custom_call.1} parent=1 // pred_check_branch
      %63 = sbr.rel (%p61) target = $region21
    $region20: #{tpu_custom_call.1} parent=1 // pred_region
      %64 = vst [vmem:[#allocation7] sm:$0xff] 0.0
    $region21: #{tpu_custom_call.1} parent=1 // pred_fallthru
      _
    %v65 = vld [vmem:[#allocation2] sm:$0xff]
    %v66 = vld [vmem:[#allocation2 + $0x8] sm:$0xff]
    %v67 = vld [vmem:[#allocation5] sm:$0xff]
    %v68 = vld [vmem:[#allocation5 + $0x8] sm:$0xff]
    %v69 = vand.u32 2147483647, %v65
    %v70 = vand.u32 2147483647, %v66
    %v71 = vsub.f32 0.0, %v69
    %v72 = vsub.f32 0.0, %v70
    %v73 = vmul.f32 %v71, 1.442695
    %v74 = vpow.pop %v73
    %v75 = vmul.f32 %v72, 1.442695
    %v76 = vpow.pop %v75
    %v77 = vadd.f32 %v74, 1.0
    %v78 = vlog2.pop %v77
    %v79 = vmul.f32 %v78, 0.6931472
    %v80 = vmul.f32 -0.5, %v74
    %v81 = vadd.f32 %v80, 1.0
    %v82 = vmul.f32 %v81, %v74
    %v83 = vand.u32 2147483647, %v74
    %vm84 = vcmp.lt.f32.partialorder %v83, 0.0004427343
    %v85 = vsel %vm84, %v82, %v79
    %v86 = vadd.f32 %v76, 1.0
    %v87 = vlog2.pop %v86
    %v88 = vmul.f32 %v87, 0.6931472
    %v89 = vmul.f32 -0.5, %v76
    %v90 = vadd.f32 %v89, 1.0
    %v91 = vmul.f32 %v90, %v76
    %v92 = vand.u32 2147483647, %v76
    %vm93 = vcmp.lt.f32.partialorder %v92, 0.0004427343
    %v94 = vsel %vm93, %v91, %v88
    %vm95 = vcmp.ge.f32.partialorder %v67, 0.5
    %vm96 = vcmp.ge.f32.partialorder %v68, 0.5
    %vm97 = vcmp.ge.f32.partialorder %v65, 0.0
    %vm98 = vcmp.ge.f32.partialorder %v66, 0.0
    %vm99 = vmxor %vm95, %vm97
    %vm100 = vmxor %vm96, %vm98
    %vm101 = vmxor %vm99, 1
    %vm102 = vmxor %vm100, 1
    %v103 = vsel %vm101, 0.0, %v69
    %v104 = vsel %vm102, 0.0, %v70
    %v105 = vadd.f32 %v103, %v85
    %v106 = vadd.f32 %v104, %v94
    %v107 = vsel %vm101, 1.0, %v74
    %v108 = vsel %vm102, 1.0, %v76
    %v109 = vadd.f32 %v74, 1.0
    %v110 = vadd.f32 %v76, 1.0
    %v111 = vrcp.pop %v109
    %v112 = vrcp.pop %v110
    %v113 = vmul.f32 %v107, %v111
    %v114 = vmul.f32 %v108, %v112
    %v115 = vsub.f32 1.0, %v113
    %v116 = vsub.f32 1.0, %v114
    %v117 = vmul.f32 %v115, %v115
    %v118 = vmul.f32 %v116, %v116
    %v119 = vmul.f32 %v117, %v105
    %v120 = vmul.f32 %v118, %v106
    %v121 = vld [vmem:[#allocation7] sm:$0xff]
    %v122 = vadd.f32 %v119, %v120
    %v123 = vadd.f32 %v121, %v122
    %124 = vst [vmem:[#allocation7] sm:$0xff] %v123
    // Predicated region
    $region22: #{tpu_custom_call.1} parent=1 // pred_check
      _
    $region23: #{tpu_custom_call.1} parent=1 // pred_check_branch
      %126 = sbr.rel (0) target = $region25
    $region24: #{tpu_custom_call.1} parent=1 // pred_region
      %s128 = ssub.s32 128, 128
      %129 = vsyncadd [#allocation4], %s128
      %s131 = sshll.u32 [#allocation7], 4
      %s132 = int_to_ptr.vmem [resolvable:$true] %s131
      %134 = dma.vmem_to_hbm [thread:$0]  %s132, 128, %s2, [#allocation4]
    $region25: #{tpu_custom_call.1} parent=1 // pred_fallthru
      _
    // Predicated region
    $region26: #{tpu_custom_call.1} parent=1 // pred_check
      _
    $region27: #{tpu_custom_call.1} parent=1 // pred_check_branch
      %136 = sbr.rel (0) target = $region29
    $region28: #{tpu_custom_call.1} parent=1 // pred_region
      %137 = dma.done [#allocation4], 128
    $region29: #{tpu_custom_call.1} parent=1 // pred_fallthru
      _
    %138 = vsyncpa [#allocation3], 1
    %139 = vsyncpa [#allocation6], 1
    %140 = vsyncpa [#allocation4], 1

</llo_original>
